<compile_context>
chip_gen: v7x
topology: tpu7x:2x2x1
jax: 0.10.0
libtpu: 0.0.40
codegen_flags: <defaults>
</compile_context>

<pallas_src>
import functools
import math

import jax
import jax.numpy as jnp
from jax.experimental import pallas as pl
from jax.experimental.pallas import tpu as pltpu


def _angle_parser_kernel(scale, y_ref, x_ref, o_ref):
    # sigmoid(a) - 0.5 == 0.5 * tanh(a / 2); the 0.5 factor cancels inside
    # arctan2 (ratio/sign invariant).  `scale` folds rad2deg and
    # angle_range/360 into a single full-tile multiply.
    # tanh lands on the otherwise-idle EUP slot, effectively free.
    y = jnp.tanh(y_ref[...].astype(jnp.float32) * 0.5)
    x = jnp.tanh(x_ref[...].astype(jnp.float32) * 0.5)
    # NOTE (v7x follow-up): if a bundle dump shows the VALU slot saturated,
    # replace jnp.arctan2 with a hand-rolled atan2 (pl.reciprocal(approx=True)
    # on the EUP + minimax polynomial with `scale` folded into coefficients).
    o_ref[...] = (scale * jnp.arctan2(y, x)).astype(o_ref.dtype)


def _round_up(a, b):
    return ((a + b - 1) // b) * b


def _is_v7x():
    try:
        return "v7" in jax.devices()[0].device_kind.lower()
    except Exception:
        return False


def angle_parser_2d(batch, angle_range=180.0, *, tile_rows=None):
    """batch: (N, 2, H, W) -> (N, H, W). Matches AngleParser2d.forward."""
    N, C, H, W = batch.shape
    assert C == 2, "AngleParser2d expects 2 channels (y, x projections)"

    # angle_range/360 * (180/pi) == angle_range / (2*pi)
    scale = float(angle_range) / (2.0 * math.pi)

    # Lane-dense view via a FREE contiguous reshape when H*W permits it.
    L = H * W
    lanes = None
    for cand in (512, 256, 128):
        if L % cand == 0:
            lanes = cand
            break
    if lanes is not None:
        R = L // lanes
        x4 = batch.reshape(N, 2, R, lanes)          # free reshape, no copy
    else:
        # W not packable into a 128-multiple: keep the natural layout.
        # Correct (masked partial lane stores), still zero extra HBM passes.
        R, lanes = H, W
        x4 = batch

    itemsize = jnp.dtype(batch.dtype).itemsize
    sub = {4: 8, 2: 16, 1: 32}.get(itemsize, 8)     # sublane pack per dtype
    is_v7x = _is_v7x()

    if tile_rows is None:
        per_buf = (4 << 20) if is_v7x else (1 << 20)   # bytes per VMEM buffer
        tile_rows = max(sub, (per_buf // (lanes * itemsize)) // sub * sub)
    if tile_rows >= R:
        tile_rows = R            # full sublane extent (always legal)
    elif tile_rows % sub:
        tile_rows = _round_up(tile_rows, sub)

    # v7x megacore: guarantee >= 2 grid steps so both TensorCores get work.
    if is_v7x and N * pl.cdiv(R, tile_rows) < 2 and R > sub:
        tile_rows = min(tile_rows, _round_up(-(-R // 2), sub))

    grid = (N, pl.cdiv(R, tile_rows))

    # Channel selection happens in the index_map: same array passed twice,
    # each spec grabs its own (n, c, row-tile) slab. Ragged edge row-tiles are
    # fine: OOB reads feed tanh/atan2 garbage whose writes are dropped.
    in_y = pl.BlockSpec((None, None, tile_rows, lanes), lambda n, t: (n, 0, t, 0))
    in_x = pl.BlockSpec((None, None, tile_rows, lanes), lambda n, t: (n, 1, t, 0))
    out_b = pl.BlockSpec((None, tile_rows, lanes), lambda n, t: (n, t, 0))

    out = pl.pallas_call(
        functools.partial(_angle_parser_kernel, scale),
        out_shape=jax.ShapeDtypeStruct((N, R, lanes), batch.dtype),
        grid_spec=pltpu.PrefetchScalarGridSpec(
            num_scalar_prefetch=0,
            grid=grid,
            in_specs=[in_y, in_x],
            out_specs=out_b,
        ),
        compiler_params=pltpu.CompilerParams(
            dimension_semantics=("parallel", "parallel"),
            vmem_limit_bytes=32 * 1024 * 1024,
        ),
    )(x4, x4)

    return out.reshape(N, H, W)                     # free reshape, no copy


def _reference(batch, angle_range=180.0):
    y = jax.nn.sigmoid(batch[:, 0]) - 0.5
    x = jax.nn.sigmoid(batch[:, 1]) - 0.5
    return angle_range / 360.0 * jnp.degrees(jnp.arctan2(y, x))


if __name__ == "__main__":
    # Case 1: canonical small shape (lane-packed free-reshape path).
    b1 = jax.random.normal(jax.random.PRNGKey(0), (2, 2, 16, 16), dtype=jnp.float32)
    o1 = jax.block_until_ready(angle_parser_2d(b1, 180.0))
    r1 = _reference(b1, 180.0)
    assert o1.shape == (2, 16, 16), o1.shape
    assert jnp.allclose(o1, r1, atol=1e-4, rtol=1e-4), "case1 mismatch"

    # Case 2: W not a 128-multiple (natural-layout fallback), multi-step grid
    # with a ragged last row-tile (40 rows, 16-row tiles).
    b2 = jax.random.normal(jax.random.PRNGKey(1), (1, 2, 40, 20), dtype=jnp.float32)
    o2 = jax.block_until_ready(angle_parser_2d(b2, 180.0, tile_rows=16))
    r2 = _reference(b2, 180.0)
    assert o2.shape == (1, 40, 20), o2.shape
    assert jnp.allclose(o2, r2, atol=1e-4, rtol=1e-4), "case2 mismatch"

    # Case 3: bf16 inputs stay bf16 across the DMA; upcast happens in-kernel.
    b3 = jax.random.normal(jax.random.PRNGKey(2), (2, 2, 64, 128),
                           dtype=jnp.float32).astype(jnp.bfloat16)
    o3 = jax.block_until_ready(angle_parser_2d(b3, 180.0))
    r3 = _reference(b3.astype(jnp.float32), 180.0)
    assert o3.shape == (2, 64, 128), o3.shape
    assert jnp.allclose(o3.astype(jnp.float32), r3, atol=0.75, rtol=0.02), "case3 mismatch"

    print("KERNEL_OK")
</pallas_src>

<mosaic_0001>
module attributes {stable_mosaic.version = 11 : i64} {
  func.func @_angle_parser_kernel(%arg0: i32, %arg1: i32, %arg2: memref<1x1x1x256xf32, #tpu.memory_space<vmem>>, %arg3: memref<1x1x1x256xf32, #tpu.memory_space<vmem>>, %arg4: memref<1x1x256xf32, #tpu.memory_space<vmem>>) attributes {dimension_semantics = [#tpu.dimension_semantics<parallel>, #tpu.dimension_semantics<parallel>], iteration_bounds = array<i64: 2, 1>, scalar_prefetch = 0 : i64, scratch_operands = 0 : i64, tpu.core_type = #tpu.core_type<tc>, window_params = [{transform_indices = @transform_0, window_bounds = array<i64: 1, 1, 1, 256>}, {transform_indices = @transform_1, window_bounds = array<i64: 1, 1, 1, 256>}, {transform_indices = @transform_2, window_bounds = array<i64: 1, 1, 256>}]} {
    %c0 = arith.constant 0 : index
    %c0_0 = arith.constant 0 : index
    %c0_1 = arith.constant 0 : index
    %c0_2 = arith.constant 0 : index
    %0 = vector.load %arg2[%c0, %c0_0, %c0_1, %c0_2] : memref<1x1x1x256xf32, #tpu.memory_space<vmem>>, vector<1x1x1x256xf32>
    %1 = vector.shape_cast %0 : vector<1x1x1x256xf32> to vector<1x256xf32>
    %cst = arith.constant 5.000000e-01 : f32
    %2 = vector.broadcast %cst : f32 to vector<1x256xf32>
    %3 = arith.mulf %1, %2 : vector<1x256xf32>
    %4 = math.tanh %3 : vector<1x256xf32>
    %c0_3 = arith.constant 0 : index
    %c0_4 = arith.constant 0 : index
    %c0_5 = arith.constant 0 : index
    %c0_6 = arith.constant 0 : index
    %5 = vector.load %arg3[%c0_3, %c0_4, %c0_5, %c0_6] : memref<1x1x1x256xf32, #tpu.memory_space<vmem>>, vector<1x1x1x256xf32>
    %6 = vector.shape_cast %5 : vector<1x1x1x256xf32> to vector<1x256xf32>
    %cst_7 = arith.constant 5.000000e-01 : f32
    %7 = vector.broadcast %cst_7 : f32 to vector<1x256xf32>
    %8 = arith.mulf %6, %7 : vector<1x256xf32>
    %9 = math.tanh %8 : vector<1x256xf32>
    %10 = math.atan2 %4, %9 : vector<1x256xf32>
    %cst_8 = arith.constant 28.6478901 : f32
    %11 = vector.broadcast %cst_8 : f32 to vector<1x256xf32>
    %12 = arith.mulf %11, %10 : vector<1x256xf32>
    %c0_9 = arith.constant 0 : index
    %c0_10 = arith.constant 0 : index
    %c0_11 = arith.constant 0 : index
    %13 = vector.load %arg4[%c0_9, %c0_10, %c0_11] : memref<1x1x256xf32, #tpu.memory_space<vmem>>, vector<1x1x256xf32>
    %14 = vector.shape_cast %13 : vector<1x1x256xf32> to vector<1x256xf32>
    %15 = vector.shape_cast %12 : vector<1x256xf32> to vector<1x1x256xf32>
    tpu.vector_store %arg4[%c0_9, %c0_10, %c0_11], %15 {strides = array<i32>} : memref<1x1x256xf32, #tpu.memory_space<vmem>>, vector<1x1x256xf32>,
    return
  }
  func.func @transform_0(%arg0: i32, %arg1: i32) -> (i32, i32, i32, i32) {
    %c0_i32 = arith.constant 0 : i32
    %c0_i32_0 = arith.constant 0 : i32
    %c0_i32_1 = arith.constant 0 : i32
    return %arg0, %c0_i32, %arg1, %c0_i32_0 : i32, i32, i32, i32
  }
  func.func @transform_1(%arg0: i32, %arg1: i32) -> (i32, i32, i32, i32) {
    %c1_i32 = arith.constant 1 : i32
    %c0_i32 = arith.constant 0 : i32
    %c0_i32_0 = arith.constant 0 : i32
    return %arg0, %c1_i32, %arg1, %c0_i32 : i32, i32, i32, i32
  }
  func.func @transform_2(%arg0: i32, %arg1: i32) -> (i32, i32, i32) {
    %c0_i32 = arith.constant 0 : i32
    %c0_i32_0 = arith.constant 0 : i32
    return %arg0, %arg1, %c0_i32 : i32, i32, i32
  }
}

</mosaic_0001>

<llo_original>
// kernel: tpu_custom_call.1
$region0: #{tpu_custom_call.1}
  #allocation0 [shape = 'u32[]', space=smem, size = 0x4, offset = 0x4, fixed_abs, tag = 'smem constant byte address 0x4 - core index']
  #allocation1 [shape = 'u32[144,128]{1,0:T(1,128)}', space=vmem, size = 0x12000, scoped, tag = 'internal scratch']
  %s0 = inlined_call_operand.hbm [shape: f32[2,2,1,256], index: 0, kind: input, shape index: {}]
  %s1 = inlined_call_operand.hbm [shape: f32[2,2,1,256], index: 1, kind: input, shape index: {}]
  %s2 = inlined_call_operand.hbm [shape: f32[2,1,256], index: 2, kind: output, shape index: {}]
  %s3 = sld [smem:[#allocation0]]
  $region49: #{tpu_custom_call.1} parent=0
    _
  %s5 = ssub.s32 1, %s3
  %s6 = scalar_select 0, %s5, %s3
  $region1: #{tpu_custom_call.1} parent=0
    #allocation2 [shape = 'u8[2048]{0}', space=vmem, size = 0x800, scoped, tag = 'input window, operand 0']
    #allocation3 [shape = 's32[2]{0}', space=sflag, size = 0x8, scoped, tag = 'scoped memory for tpu_custom_call.1']
    #allocation4 [shape = 's32[2]{0}', space=sflag, size = 0x8, scoped, tag = 'scoped memory for tpu_custom_call.1']
    #allocation5 [shape = 'u8[2048]{0}', space=vmem, size = 0x800, scoped, tag = 'input window, operand 1']
    #allocation6 [shape = 's32[2]{0}', space=sflag, size = 0x8, scoped, tag = 'scoped memory for tpu_custom_call.1']
    #allocation7 [shape = 'u8[2048]{0}', space=vmem, size = 0x800, scoped, tag = 'output window, operand 0']
    %7 = vsyncpa [#allocation3], 0
    %s8 = scalar_lea.sflag [#allocation3], 1
    %9 = vsyncpa %s8, 0
    %10 = vsyncpa [#allocation6], 0
    %s11 = scalar_lea.sflag [#allocation6], 1
    %12 = vsyncpa %s11, 0
    %13 = vsyncpa [#allocation4], 0
    %s14 = scalar_lea.sflag [#allocation4], 1
    %15 = vsyncpa %s14, 0
    loop: start=0, step=1, limit=4
    $region2: #{tpu_custom_call.1} parent=1 // loop_pre_header
      _
    $region3: #{tpu_custom_call.1} parent=1 // loop_header
      %s17 = sphi 0, %s21
      %p18 = scmp.ge.s32.totalorder %s17, 4
      %s24 = sphi 0, %s36
      %s25 = sphi 0, %s32
      %s26 = sphi 0, %s24
      %s27 = sphi 0, %s25
      %s28 = sphi 0, %s26
      %s29 = sphi 0, %s27
      %s41 = sphi 0, %s43
      %s44 = sphi 0, %s41
      %s45 = sphi 0, %s44
      %s61 = sphi 0, %s45
      %s69 = sphi 0, %s71
      %s72 = sphi 0, %s69
      %s73 = sphi 0, %s72
      %s89 = sphi 0, %s73
      %s97 = sphi 0, %s99
      %s100 = sphi 0, %s97
      %s101 = sphi 0, %s100
      %s117 = sphi 0, %s101
    $region4: #{tpu_custom_call.1} parent=1 // loop_header_branch
      %20 = sbr.rel (%p18) target = $region8
    $region5: #{tpu_custom_call.1} parent=1 // loop_body
      %s22 = ssub.s32 %s17, 1
      %s23 = ssub.s32 %s17, 2
      %s30 = sadd.s32 1, %s25
      %p31 = scmp.ge.s32.totalorder %s30, 1
      %s32 = scalar_select %p31, 0, %s30
      %s33 = sadd.s32 1, %s24
      %s34 = scalar_select %p31, %s33, %s24
      %p35 = scmp.ge.s32.totalorder %s34, 2
      %s36 = scalar_select %p35, 0, %s34
      %s37 = ssub.s32 %s24, %s36
      %s38 = ssub.s32 %s25, %s32
      %s39 = sor.u32 %s37, %s38
      %p40 = scmp.eq.s32.totalorder %s39, 0
      %s42 = sadd.s32 %s41, 1
      %s43 = scalar_select %p40, %s41, %s42
      %p46 = pneg %p40
      %p47 = scmp.eq.s32.totalorder %s17, 1
      %p48 = por %p46, %p47
      %p49 = scmp.ne.s32.totalorder %s41, %s44
      %p50 = scmp.eq.s32.totalorder %s17, 0
      %p51 = por %p49, %p50
      %p52 = scmp.ne.s32.totalorder %s41, %s44
      %p53 = scmp.eq.s32.totalorder %s22, 1
      %p54 = por %p52, %p53
      %p55 = scmp.ne.s32.totalorder %s44, %s45
      %p56 = scmp.eq.s32.totalorder %s22, 0
      %p57 = por %p55, %p56
      %p58 = scmp.ne.s32.totalorder %s44, %s45
      %p59 = scmp.eq.s32.totalorder %s23, 1
      %p60 = por %p58, %p59
      %p62 = scmp.ne.s32.totalorder %s45, %s61
      %p63 = scmp.eq.s32.totalorder %s23, 0
      %p64 = por %p62, %p63
      %s65 = ssub.s32 %s24, %s36
      %s66 = ssub.s32 %s25, %s32
      %s67 = sor.u32 %s65, %s66
      %p68 = scmp.eq.s32.totalorder %s67, 0
      %s70 = sadd.s32 %s69, 1
      %s71 = scalar_select %p68, %s69, %s70
      %p74 = pneg %p68
      %p75 = scmp.eq.s32.totalorder %s17, 1
      %p76 = por %p74, %p75
      %p77 = scmp.ne.s32.totalorder %s69, %s72
      %p78 = scmp.eq.s32.totalorder %s17, 0
      %p79 = por %p77, %p78
      %p80 = scmp.ne.s32.totalorder %s69, %s72
      %p81 = scmp.eq.s32.totalorder %s22, 1
      %p82 = por %p80, %p81
      %p83 = scmp.ne.s32.totalorder %s72, %s73
      %p84 = scmp.eq.s32.totalorder %s22, 0
      %p85 = por %p83, %p84
      %p86 = scmp.ne.s32.totalorder %s72, %s73
      %p87 = scmp.eq.s32.totalorder %s23, 1
      %p88 = por %p86, %p87
      %p90 = scmp.ne.s32.totalorder %s73, %s89
      %p91 = scmp.eq.s32.totalorder %s23, 0
      %p92 = por %p90, %p91
      %s93 = ssub.s32 %s24, %s36
      %s94 = ssub.s32 %s25, %s32
      %s95 = sor.u32 %s93, %s94
      %p96 = scmp.eq.s32.totalorder %s95, 0
      %s98 = sadd.s32 %s97, 1
      %s99 = scalar_select %p96, %s97, %s98
      %p102 = pneg %p96
      %p103 = scmp.eq.s32.totalorder %s17, 1
      %p104 = por %p102, %p103
      %p105 = scmp.ne.s32.totalorder %s97, %s100
      %p106 = scmp.eq.s32.totalorder %s17, 0
      %p107 = por %p105, %p106
      %p108 = scmp.ne.s32.totalorder %s97, %s100
      %p109 = scmp.eq.s32.totalorder %s22, 1
      %p110 = por %p108, %p109
      %p111 = scmp.ne.s32.totalorder %s100, %s101
      %p112 = scmp.eq.s32.totalorder %s22, 0
      %p113 = por %p111, %p112
      %p114 = scmp.ne.s32.totalorder %s100, %s101
      %p115 = scmp.eq.s32.totalorder %s23, 1
      %p116 = por %p114, %p115
      %p118 = scmp.ne.s32.totalorder %s101, %s117
      %p119 = scmp.eq.s32.totalorder %s23, 0
      %p120 = por %p118, %p119
      %p121 = scmp.le.s32.totalorder 1, %s17
      %p122 = scmp.lt.s32.totalorder %s17, 3
      %p123 = pnand %p121, %p122
      %p124 = pneg %p123
      // Predicated region
      $region9: #{tpu_custom_call.1} parent=5 // pred_check
        _
      $region10: #{tpu_custom_call.1} parent=5 // pred_check_branch
        %126 = sbr.rel (%p123) target = $region12
      $region11: #{tpu_custom_call.1} parent=5 // pred_region
        %s127 = ssub.s32 %s17, 1
      $region12: #{tpu_custom_call.1} parent=5 // pred_fallthru
        _
      %p128 = scmp.lt.s32.totalorder %s17, 2
      // Predicated region
      $region13: #{tpu_custom_call.1} parent=5 // pred_check
        %p129 = pneg %p128
      $region14: #{tpu_custom_call.1} parent=5 // pred_check_branch
        %131 = sbr.rel (%p129) target = $region16
      $region15: #{tpu_custom_call.1} parent=5 // pred_region
        // Predicated region
        $region17: #{tpu_custom_call.1} parent=15 // pred_check
          %p132 = pneg %p51
        $region18: #{tpu_custom_call.1} parent=15 // pred_check_branch
          %134 = sbr.rel (%p132) target = $region20
        $region19: #{tpu_custom_call.1} parent=15 // pred_region
          %s135 = sand.u32 %s41, 1
          %s136 = scalar_lea.sflag [#allocation3], %s135
          %s137 = sand.u32 %s41, 1
          %s138 = smul.addr %s137, 2
          %s139 = scalar_lea.vmem [#allocation2], %s138
          %s141 = ssub.s32 32, 32
          %142 = vsyncadd %s136, %s141
          %s143 = smul.addr %s25, 2
          %s144 = smul.addr %s24, 4
          %s145 = sadd.s32 %s143, %s144
          %s146 = smul.addr %s145, 16
          %s147 = scalar_lea.hbm %s0, %s146
          %s149 = sshll.u32 %s139, 4
          %s150 = int_to_ptr.vmem [resolvable:$true] %s149
          %152 = dma.hbm_to_vmem [thread:$0]  %s147, 32, %s150, %s136
        $region20: #{tpu_custom_call.1} parent=15 // pred_fallthru
          _
        // Predicated region
        $region21: #{tpu_custom_call.1} parent=15 // pred_check
          %p153 = pneg %p79
        $region22: #{tpu_custom_call.1} parent=15 // pred_check_branch
          %155 = sbr.rel (%p153) target = $region24
        $region23: #{tpu_custom_call.1} parent=15 // pred_region
          %s156 = sand.u32 %s69, 1
          %s157 = scalar_lea.sflag [#allocation6], %s156
          %s158 = sand.u32 %s69, 1
          %s159 = smul.addr %s158, 2
          %s160 = scalar_lea.vmem [#allocation5], %s159
          %s162 = ssub.s32 32, 32
          %163 = vsyncadd %s157, %s162
          %s164 = smul.addr %s25, 2
          %s165 = sadd.s32 %s164, 2
          %s166 = smul.addr %s24, 4
          %s167 = sadd.s32 %s165, %s166
          %s168 = smul.addr %s167, 16
          %s169 = scalar_lea.hbm %s1, %s168
          %s171 = sshll.u32 %s160, 4
          %s172 = int_to_ptr.vmem [resolvable:$true] %s171
          %174 = dma.hbm_to_vmem [thread:$0]  %s169, 32, %s172, %s157
        $region24: #{tpu_custom_call.1} parent=15 // pred_fallthru
          _
      $region16: #{tpu_custom_call.1} parent=5 // pred_fallthru
        _
      %p175 = scmp.le.s32.totalorder 1, %s17
      %p176 = scmp.lt.s32.totalorder %s17, 3
      %p177 = pnand %p175, %p176
      %p178 = pneg %p177
      // Predicated region
      $region25: #{tpu_custom_call.1} parent=5 // pred_check
        _
      $region26: #{tpu_custom_call.1} parent=5 // pred_check_branch
        %180 = sbr.rel (%p177) target = $region28
      $region27: #{tpu_custom_call.1} parent=5 // pred_region
        %s181 = ssub.s32 %s17, 1
        %s182 = sand.u32 %s44, 1
        %s183 = scalar_lea.sflag [#allocation3], %s182
        %s184 = sand.u32 %s44, 1
        %s185 = smul.addr %s184, 2
        %s186 = scalar_lea.vmem [#allocation2], %s185
        // Predicated region
        $region29: #{tpu_custom_call.1} parent=27 // pred_check
          %p187 = pneg %p57
        $region30: #{tpu_custom_call.1} parent=27 // pred_check_branch
          %189 = sbr.rel (%p187) target = $region32
        $region31: #{tpu_custom_call.1} parent=27 // pred_region
          %190 = dma.done %s183, 32
        $region32: #{tpu_custom_call.1} parent=27 // pred_fallthru
          _
        %s191 = sand.u32 %s72, 1
        %s192 = scalar_lea.sflag [#allocation6], %s191
        %s193 = sand.u32 %s72, 1
        %s194 = smul.addr %s193, 2
        %s195 = scalar_lea.vmem [#allocation5], %s194
        // Predicated region
        $region33: #{tpu_custom_call.1} parent=27 // pred_check
          %p196 = pneg %p85
        $region34: #{tpu_custom_call.1} parent=27 // pred_check_branch
          %198 = sbr.rel (%p196) target = $region36
        $region35: #{tpu_custom_call.1} parent=27 // pred_region
          %199 = dma.done %s192, 32
        $region36: #{tpu_custom_call.1} parent=27 // pred_fallthru
          _
        %s200 = sand.u32 %s44, 1
        %s201 = scalar_lea.sflag [#allocation3], %s200
        %s202 = sand.u32 %s44, 1
        %s203 = smul.addr %s202, 2
        %s204 = scalar_lea.vmem [#allocation2], %s203
        %p205 = pneg %p57
        %p206 = pneg %p54
        %s207 = sand.u32 %s72, 1
        %s208 = scalar_lea.sflag [#allocation6], %s207
        %s209 = sand.u32 %s72, 1
        %s210 = smul.addr %s209, 2
        %s211 = scalar_lea.vmem [#allocation5], %s210
        %p212 = pneg %p85
        %p213 = pneg %p82
        %p214 = pneg %p113
        %p215 = pneg %p110
        %s216 = sand.u32 %s100, 1
        %s217 = scalar_lea.sflag [#allocation4], %s216
        %s218 = sand.u32 %s100, 1
        %s219 = smul.addr %s218, 2
        %s220 = scalar_lea.vmem [#allocation7], %s219
        %v221 = vld [vmem:[%s186] sm:$0x3]
        %v222 = vmul.f32 %v221, 0.5
        %v223 = vtanh.pop %v222
        %v224 = vld [vmem:[%s195] sm:$0x3]
        %v225 = vmul.f32 %v224, 0.5
        %v226 = vtanh.pop %v225
        %v227 = vand.u32 2147483647, %v226
        %v228 = vand.u32 2147483647, %v223
        %v229 = vmin.f32 %v227, %v228
        %v230 = vmax.f32 %v227, %v228
        %v231 = vrcp.pop %v230
        %v232 = vmul.f32 %v229, %v231
        %v233 = vmul.f32 %v232, %v232
        %v234 = vmul.f32 0.002785687, %v233
        %v235 = vadd.f32 %v234, -0.015866
        %v236 = vmul.f32 %v235, %v233
        %v237 = vadd.f32 %v236, 0.04247222
        %v238 = vmul.f32 %v237, %v233
        %v239 = vadd.f32 %v238, -0.074975304
        %v240 = vmul.f32 %v239, %v233
        %v241 = vadd.f32 %v240, 0.1064488
        %v242 = vmul.f32 %v241, %v233
        %v243 = vadd.f32 %v242, -0.14207031
        %v244 = vmul.f32 %v243, %v233
        %v245 = vadd.f32 %v244, 0.19993454
        %v246 = vmul.f32 %v245, %v233
        %v247 = vadd.f32 %v246, -0.33333147
        %v248 = vmul.f32 %v247, %v233
        %v249 = vmul.f32 %v248, %v232
        %v250 = vadd.f32 %v249, %v232
        %vm251 = vcmp.gt.f32.partialorder %v228, %v227
        %v252 = vsub.f32 1.5707964, %v250
        %v253 = vsel %vm251, %v252, %v250
        %vm254 = vcmp.lt.f32.partialorder %v226, 0.0
        %v255 = vsub.f32 3.1415927, %v253
        %v256 = vsel %vm254, %v255, %v253
        %vm257 = vcmp.lt.s32.totalorder %v226, 0
        %v258 = vsel %vm257, 3.1415927, 0.0
        %vm259 = vcmp.eq.f32.partialorder %v223, 0.0
        %v260 = vsel %vm259, %v258, %v256
        %vm261 = vcmp.ne.f32.partialorder %v226, %v226
        %vm262 = vcmp.ne.f32.partialorder %v223, %v223
        %vm263 = vmor %vm261, %vm262
        %v264 = vsel %vm263, nan, %v260
        %vm265 = vcmp.lt.f32.partialorder %v226, 0.0
        %v266 = vsel %vm265, 2.3561945, 0.7853982
        %vm267 = vcmp.eq.s32.totalorder %v227, inf
        %vm268 = vcmp.eq.s32.totalorder %v228, inf
        %vm269 = vmand %vm267, %vm268
        %v270 = vsel %vm269, %v266, %v264
        %v271 = vand.u32 2147483647, %v270
        %v272 = vand.u32 %v223, 2147483648
        %v273 = vor.u32 %v271, %v272
        %v274 = vmul.f32 %v273, 28.64789
        %v275 = vlaneseq
        %vm276 = vcmp.ge.s32.totalorder %v275, 0
        %vm277 = vcmp.lt.s32.totalorder %v275, 256
        %vm278 = vmand %vm276, %vm277
        %279 = vst.msk [vmem:[%s220] sm:$0x3] %vm278, %v274
        %s280 = sand.u32 %s100, 1
        %s281 = scalar_lea.sflag [#allocation4], %s280
        %s282 = sand.u32 %s100, 1
        %s283 = smul.addr %s282, 2
        %s284 = scalar_lea.vmem [#allocation7], %s283
        // Predicated region
        $region37: #{tpu_custom_call.1} parent=27 // pred_check
          %p285 = pneg %p110
        $region38: #{tpu_custom_call.1} parent=27 // pred_check_branch
          %287 = sbr.rel (%p285) target = $region40
        $region39: #{tpu_custom_call.1} parent=27 // pred_region
          %s289 = ssub.s32 32, 32
          %290 = vsyncadd %s281, %s289
          %s291 = smul.addr %s27, 2
          %s292 = smul.addr %s26, 2
          %s293 = sadd.s32 %s291, %s292
          %s294 = smul.addr %s293, 16
          %s295 = scalar_lea.hbm %s2, %s294
          %s297 = sshll.u32 %s284, 4
          %s298 = int_to_ptr.vmem [resolvable:$true] %s297
          %300 = dma.vmem_to_hbm [thread:$0]  %s298, 32, %s295, %s281
        $region40: #{tpu_custom_call.1} parent=27 // pred_fallthru
          _
      $region28: #{tpu_custom_call.1} parent=5 // pred_fallthru
        _
      %p301 = scmp.le.s32.totalorder 2, %s17
      // Predicated region
      $region41: #{tpu_custom_call.1} parent=5 // pred_check
        %p302 = pneg %p301
      $region42: #{tpu_custom_call.1} parent=5 // pred_check_branch
        %304 = sbr.rel (%p302) target = $region44
      $region43: #{tpu_custom_call.1} parent=5 // pred_region
        %s305 = ssub.s32 %s17, 2
        // Predicated region
        $region45: #{tpu_custom_call.1} parent=43 // pred_check
          %p306 = pneg %p116
        $region46: #{tpu_custom_call.1} parent=43 // pred_check_branch
          %308 = sbr.rel (%p306) target = $region48
        $region47: #{tpu_custom_call.1} parent=43 // pred_region
          %s309 = sand.u32 %s101, 1
          %s310 = scalar_lea.sflag [#allocation4], %s309
          %s311 = sand.u32 %s101, 1
          %s312 = smul.addr %s311, 2
          %s313 = scalar_lea.vmem [#allocation7], %s312
          %314 = dma.done %s310, 32
        $region48: #{tpu_custom_call.1} parent=43 // pred_fallthru
          _
      $region44: #{tpu_custom_call.1} parent=5 // pred_fallthru
        _
    $region6: #{tpu_custom_call.1} parent=1 // loop_footer
      %s21 = sadd.s32 1, %s17
    $region7: #{tpu_custom_call.1} parent=1 // loop_footer_branch
      %16 = sbr.rel target = $region3
    $region8: #{tpu_custom_call.1} parent=1 // loop_exit
      _
    %315 = vsyncpa [#allocation3], 1
    %s316 = scalar_lea.sflag [#allocation3], 1
    %317 = vsyncpa %s316, 1
    %318 = vsyncpa [#allocation6], 1
    %s319 = scalar_lea.sflag [#allocation6], 1
    %320 = vsyncpa %s319, 1
    %321 = vsyncpa [#allocation4], 1
    %s322 = scalar_lea.sflag [#allocation4], 1
    %323 = vsyncpa %s322, 1

</llo_original>
